<compile_context>
chip_gen: v5e
topology: v5e:2x2
jax: 0.10.0
libtpu: 0.0.40
codegen_flags: <defaults>
</compile_context>

<pallas_src>
import math
import functools

import jax
import jax.numpy as jnp
from jax.experimental import pallas as pl
from jax.experimental.pallas import tpu as pltpu


# ---------------------------------------------------------------------------
# Buffer setup (mirrors nn.Module.__init__); build once at the model's dtype.
# ---------------------------------------------------------------------------
def make_sinusoidal_pe(max_len: int, d_model: int, dtype=jnp.float32) -> jnp.ndarray:
    """Build the (1, max_len, d_model) sinusoidal positional-encoding buffer."""
    position = jnp.arange(max_len, dtype=jnp.float32)[:, None]              # (max_len, 1)
    div_term = jnp.exp(
        jnp.arange(0, d_model, 2, dtype=jnp.float32) * (-math.log(10000.0) / d_model)
    )                                                                        # (d_model//2,)
    ang = position * div_term                                                # (max_len, d_model//2)
    pe = jnp.zeros((max_len, d_model), dtype=jnp.float32)
    pe = pe.at[:, 0::2].set(jnp.sin(ang))
    pe = pe.at[:, 1::2].set(jnp.cos(ang))
    return pe[None, :, :].astype(dtype)                                      # (1, max_len, d_model)


# ---------------------------------------------------------------------------
# Pallas kernels
# ---------------------------------------------------------------------------
def _pe_add_eval_kernel(x_ref, pe_ref, o_ref):
    # x_ref: (rows, B*D), pe_ref: (1, B*D) — broadcast over the row axis.
    o_ref[...] = x_ref[...] + pe_ref[...]


def _pe_add_dropout_kernel(x_ref, pe_ref, bits_ref, o_ref, *, threshold: int, scale: float):
    # Inverted dropout via integer threshold: keep iff u32 bits >= p * 2^32.
    y = x_ref[...] + pe_ref[...]
    keep = bits_ref[...] >= jnp.uint32(threshold)
    o_ref[...] = jnp.where(
        keep, y.astype(jnp.float32) * jnp.float32(scale), jnp.float32(0.0)
    ).astype(o_ref.dtype)


# ---------------------------------------------------------------------------
# Tiling helper: keep each tile a couple of MiB (fits v5e/v6e/v7x scoped VMEM
# once double-buffered), rows a multiple of 16 unless the full axis is smaller.
# ---------------------------------------------------------------------------
def _choose_block_rows(n_rows: int, row_bytes: int, target_bytes: int = 2 * 1024 * 1024) -> int:
    if n_rows * row_bytes <= target_bytes:
        return n_rows
    rows = max(16, (target_bytes // max(row_bytes, 1)) // 16 * 16)
    return min(int(rows), n_rows)


# ---------------------------------------------------------------------------
# Wrapper
# ---------------------------------------------------------------------------
def positional_encoding_forward(
    x: jnp.ndarray,
    pe: jnp.ndarray,
    *,
    dropout_p: float = 0.1,
    training: bool = False,
    rng_key=None,
) -> jnp.ndarray:
    """Apply PositionalEncoding.forward to x of shape (seq_len, batch, d_model)."""
    S, B, D = x.shape
    BD = B * D

    # Faithful to the PyTorch code: self.pe[:, :x.size(1)]  (sliced by the batch dim
    # and broadcast over seq_len).  Collapse to a single lane-dense row.
    pe_row = pe[:, :B, :].astype(x.dtype).reshape(1, BD)        # (1, B*D)
    x2d = x.reshape(S, BD)                                      # lane-dense 2D slab

    row_bytes = int(BD) * jnp.dtype(x.dtype).itemsize
    block_rows = _choose_block_rows(S, row_bytes)
    grid = (pl.cdiv(S, block_rows),)

    row_spec = pl.BlockSpec((block_rows, BD), lambda i: (i, 0))
    pe_spec = pl.BlockSpec((1, BD), lambda i: (0, 0))           # constant block -> stays resident
    cparams = pltpu.CompilerParams(dimension_semantics=("parallel",))

    if training and dropout_p > 0.0:
        if rng_key is None:
            rng_key = jax.random.PRNGKey(0)
        bits = jax.random.bits(rng_key, (S, BD), dtype=jnp.uint32)
        threshold = min(int(round(dropout_p * float(1 << 32))), (1 << 32) - 1)
        scale = 1.0 / (1.0 - dropout_p)
        kernel = functools.partial(_pe_add_dropout_kernel, threshold=threshold, scale=scale)
        out2d = pl.pallas_call(
            kernel,
            out_shape=jax.ShapeDtypeStruct((S, BD), x.dtype),
            grid=grid,
            in_specs=[row_spec, pe_spec, row_spec],
            out_specs=row_spec,
            compiler_params=cparams,
        )(x2d, pe_row, bits)
    else:
        out2d = pl.pallas_call(
            _pe_add_eval_kernel,
            out_shape=jax.ShapeDtypeStruct((S, BD), x.dtype),
            grid=grid,
            in_specs=[row_spec, pe_spec],
            out_specs=row_spec,
            compiler_params=cparams,
        )(x2d, pe_row)

    return out2d.reshape(S, B, D)


# ---------------------------------------------------------------------------
# Demo / correctness check
# ---------------------------------------------------------------------------
if __name__ == "__main__":
    d_model = 32
    max_len = 64
    seq_len = 8
    batch = 2
    dropout_p = 0.1

    key = jax.random.PRNGKey(0)
    x = jax.random.normal(key, (seq_len, batch, d_model), dtype=jnp.float32)
    pe = make_sinusoidal_pe(max_len, d_model, dtype=jnp.float32)

    # Eval-mode forward (dropout is identity) — deterministic check vs pure-JAX ref.
    out = positional_encoding_forward(x, pe, dropout_p=dropout_p, training=False)
    out = jax.block_until_ready(out)

    ref = x + pe[:, :batch, :]
    assert out.shape == x.shape
    assert jnp.allclose(out, ref, atol=1e-6, rtol=1e-6), "eval mismatch vs reference"

    # Train-mode forward: every output element must be either 0 (dropped) or
    # (x + pe) / (1 - p) (kept, inverted-dropout scaling).
    out_train = positional_encoding_forward(
        x, pe, dropout_p=dropout_p, training=True, rng_key=jax.random.PRNGKey(123)
    )
    out_train = jax.block_until_ready(out_train)
    assert out_train.shape == x.shape
    scale = 1.0 / (1.0 - dropout_p)
    dropped = jnp.isclose(out_train, 0.0, atol=1e-6)
    kept_ok = jnp.isclose(out_train, ref * scale, atol=1e-4, rtol=1e-4)
    assert bool(jnp.all(dropped | kept_ok)), "train output not consistent with dropout semantics"

    print("KERNEL_OK")
</pallas_src>

<mosaic_0001>
module attributes {stable_mosaic.version = 11 : i64} {
  func.func @_pe_add_eval_kernel(%arg0: i32, %arg1: memref<8x64xf32, #tpu.memory_space<vmem>>, %arg2: memref<1x64xf32, #tpu.memory_space<vmem>>, %arg3: memref<8x64xf32, #tpu.memory_space<vmem>>) attributes {dimension_semantics = [#tpu.dimension_semantics<parallel>], iteration_bounds = array<i64: 1>, scalar_prefetch = 0 : i64, scratch_operands = 0 : i64, tpu.core_type = #tpu.core_type<tc>, window_params = [{transform_indices = @transform_0, window_bounds = array<i64: 8, 64>}, {pipeline_mode = #tpu.pipeline_mode<synchronous>, transform_indices = @transform_1, window_bounds = array<i64: 1, 64>}, {transform_indices = @transform_2, window_bounds = array<i64: 8, 64>}]} {
    %c0 = arith.constant 0 : index
    %c0_0 = arith.constant 0 : index
    %0 = vector.load %arg1[%c0, %c0_0] : memref<8x64xf32, #tpu.memory_space<vmem>>, vector<8x64xf32>
    %c0_1 = arith.constant 0 : index
    %c0_2 = arith.constant 0 : index
    %1 = vector.load %arg2[%c0_1, %c0_2] : memref<1x64xf32, #tpu.memory_space<vmem>>, vector<1x64xf32>
    %2 = vector.broadcast %1 : vector<1x64xf32> to vector<8x64xf32>
    %3 = arith.addf %0, %2 : vector<8x64xf32>
    %c0_3 = arith.constant 0 : index
    %c0_4 = arith.constant 0 : index
    %4 = vector.load %arg3[%c0_3, %c0_4] : memref<8x64xf32, #tpu.memory_space<vmem>>, vector<8x64xf32>
    tpu.vector_store %arg3[%c0_3, %c0_4], %3 {strides = array<i32>} : memref<8x64xf32, #tpu.memory_space<vmem>>, vector<8x64xf32>,
    return
  }
  func.func @transform_0(%arg0: i32) -> (i32, i32) {
    %c0_i32 = arith.constant 0 : i32
    %c0_i32_0 = arith.constant 0 : i32
    return %arg0, %c0_i32 : i32, i32
  }
  func.func @transform_1(%arg0: i32) -> (i32, i32) {
    %c0_i32 = arith.constant 0 : i32
    %c0_i32_0 = arith.constant 0 : i32
    %c0_i32_1 = arith.constant 0 : i32
    return %c0_i32, %c0_i32_0 : i32, i32
  }
  func.func @transform_2(%arg0: i32) -> (i32, i32) {
    %c0_i32 = arith.constant 0 : i32
    %c0_i32_0 = arith.constant 0 : i32
    return %arg0, %c0_i32 : i32, i32
  }
}

</mosaic_0001>

<llo_original>
// kernel: tpu_custom_call.1
$region0: #{tpu_custom_call.1}
  #allocation0 [shape = 'u32[]', space=smem, size = 0x4, offset = 0x4, fixed_abs, tag = 'smem constant byte address 0x4 - core index']
  #allocation1 [shape = 'u32[72,128]{1,0:T(1,128)}', space=vmem, size = 0x9000, scoped, tag = 'internal scratch']
  %s0 = inlined_call_operand.hbm [shape: f32[8,64], index: 0, kind: input, shape index: {}]
  %s1 = inlined_call_operand.hbm [shape: f32[1,64], index: 1, kind: input, shape index: {}]
  %s2 = inlined_call_operand.hbm [shape: f32[8,64], index: 2, kind: output, shape index: {}]
  %s3 = sld [smem:[#allocation0]]
  $region26: #{tpu_custom_call.1} parent=0
    _
  %s5 = ssub.s32 1, %s3
  %s6 = scalar_select 0, %s5, %s3
  $region1: #{tpu_custom_call.1} parent=0
    #allocation2 [shape = 'u8[4096]{0}', space=vmem, size = 0x1000, scoped, tag = 'input window, operand 0, single buffered']
    #allocation3 [shape = 's32[1]{0}', space=sflag, size = 0x4, scoped, tag = 'scoped memory for tpu_custom_call.1']
    #allocation4 [shape = 's32[1]{0}', space=sflag, size = 0x4, scoped, tag = 'scoped memory for tpu_custom_call.1']
    #allocation5 [shape = 'u8[512]{0}', space=vmem, size = 0x400, scoped, tag = 'input window, operand 1, single buffered']
    #allocation6 [shape = 's32[1]{0}', space=sflag, size = 0x4, scoped, tag = 'scoped memory for tpu_custom_call.1']
    #allocation7 [shape = 'u8[4096]{0}', space=vmem, size = 0x1000, scoped, tag = 'output window, operand 0, single buffered']
    %7 = vsyncpa [#allocation3], 0
    %8 = vsyncpa [#allocation6], 0
    %9 = vsyncpa [#allocation4], 0
    // Predicated region
    $region2: #{tpu_custom_call.1} parent=1 // pred_check
      _
    $region3: #{tpu_custom_call.1} parent=1 // pred_check_branch
      %11 = sbr.rel (0) target = $region5
    $region4: #{tpu_custom_call.1} parent=1 // pred_region
      %13 = vsyncadd [#allocation3], 0
      %s15 = sshll.u32 %s0, 4
      %s16 = int_to_ptr.hbm [resolvable:$true] %s15
      %s17 = sshll.u32 [#allocation2], 4
      %s18 = int_to_ptr.vmem [resolvable:$true] %s17
      %20 = dma.hbm_to_vmem [thread:$0]  %s16, 128, %s18, [#allocation3]
    $region5: #{tpu_custom_call.1} parent=1 // pred_fallthru
      _
    // Predicated region
    $region6: #{tpu_custom_call.1} parent=1 // pred_check
      _
    $region7: #{tpu_custom_call.1} parent=1 // pred_check_branch
      %22 = sbr.rel (0) target = $region9
    $region8: #{tpu_custom_call.1} parent=1 // pred_region
      %24 = vsyncadd [#allocation6], 0
      %s26 = sshll.u32 %s1, 4
      %s27 = int_to_ptr.hbm [resolvable:$true] %s26
      %s28 = sshll.u32 [#allocation5], 4
      %s29 = int_to_ptr.vmem [resolvable:$true] %s28
      %31 = dma.hbm_to_vmem [thread:$0]  %s27, 16, %s29, [#allocation6]
    $region9: #{tpu_custom_call.1} parent=1 // pred_fallthru
      _
    // Predicated region
    $region10: #{tpu_custom_call.1} parent=1 // pred_check
      _
    $region11: #{tpu_custom_call.1} parent=1 // pred_check_branch
      %33 = sbr.rel (0) target = $region13
    $region12: #{tpu_custom_call.1} parent=1 // pred_region
      %35 = dma.done [#allocation3], 128
    $region13: #{tpu_custom_call.1} parent=1 // pred_fallthru
      _
    // Predicated region
    $region14: #{tpu_custom_call.1} parent=1 // pred_check
      _
    $region15: #{tpu_custom_call.1} parent=1 // pred_check_branch
      %37 = sbr.rel (0) target = $region17
    $region16: #{tpu_custom_call.1} parent=1 // pred_region
      %39 = dma.done [#allocation6], 16
    $region17: #{tpu_custom_call.1} parent=1 // pred_fallthru
      _
    %v40 = vld [vmem:[#allocation2] sm:$0xff]
    %v41 = vld [vmem:[#allocation5] sm:$0x1]
    %v43 = vperm.slane %v41, 0
    %v45 = vadd.f32 %v40, %v43
    %vm46 = vcmask 523264
    %47 = vst.msk [vmem:[#allocation7] sm:$0xff] %vm46, %v45
    // Predicated region
    $region18: #{tpu_custom_call.1} parent=1 // pred_check
      _
    $region19: #{tpu_custom_call.1} parent=1 // pred_check_branch
      %49 = sbr.rel (0) target = $region21
    $region20: #{tpu_custom_call.1} parent=1 // pred_region
      %51 = vsyncadd [#allocation4], 0
      %s53 = sshll.u32 [#allocation7], 4
      %s54 = int_to_ptr.vmem [resolvable:$true] %s53
      %s55 = sshll.u32 %s2, 4
      %s56 = int_to_ptr.hbm [resolvable:$true] %s55
      %58 = dma.vmem_to_hbm [thread:$0]  %s54, 128, %s56, [#allocation4]
    $region21: #{tpu_custom_call.1} parent=1 // pred_fallthru
      _
    // Predicated region
    $region22: #{tpu_custom_call.1} parent=1 // pred_check
      _
    $region23: #{tpu_custom_call.1} parent=1 // pred_check_branch
      %60 = sbr.rel (0) target = $region25
    $region24: #{tpu_custom_call.1} parent=1 // pred_region
      %62 = dma.done [#allocation4], 128
    $region25: #{tpu_custom_call.1} parent=1 // pred_fallthru
      _
    %63 = vsyncpa [#allocation3], 1
    %64 = vsyncpa [#allocation6], 1
    %65 = vsyncpa [#allocation4], 1

</llo_original>
